<compile_context>
chip_gen: v5e
topology: v5e:2x2
jax: 0.10.0
libtpu: 0.0.40
codegen_flags: <defaults>
</compile_context>

<pallas_src>
from functools import partial

import jax
import jax.numpy as jnp
from jax.experimental import pallas as pl
from jax.experimental.pallas import tpu as pltpu

_LANE = 128       # vreg lane width
_SUBLANE = 8      # vreg sublane count
_MAX_TILE_B = 1024


def _round_up(n, m):
    return ((n + m - 1) // m) * m


def _pick_tile_b(bp):
    """Batch tile: >=2 grid steps once bp >= 16 (v7x 2 TCs), <=1024 rows,
    chosen from bp so batch over-padding stays < 8 rows per step."""
    if bp < 2 * _SUBLANE:
        return bp
    steps = max(2, pl.cdiv(bp, _MAX_TILE_B))
    return _round_up(pl.cdiv(bp, steps), _SUBLANE)


def mlp_kernel(x_ref, w1_ref, b1_ref, w2_ref, b2_ref, o_ref):
    # Fused fc1 -> ReLU -> fc2, all in VMEM.  bf16 operands on the MXU with
    # f32 accumulation; bias add + ReLU on the VPU in f32.
    h = jnp.dot(x_ref[...], w1_ref[...], preferred_element_type=jnp.float32)
    h = jnp.maximum(h + b1_ref[...], 0.0)                    # (TB, Hp) + (1, Hp)
    y = jnp.dot(h.astype(jnp.bfloat16), w2_ref[...],
                preferred_element_type=jnp.float32)
    o_ref[...] = (y + b2_ref[...]).astype(o_ref.dtype)


def prepare_mlp_params(w1, b1, w2, b2):
    """Pad hidden/output dims to 128 lanes and cast weights to bf16, once.

    w1: (I, H), b1: (1, H), w2: (H, O), b2: (1, O)  ->  padded kernel params.
    """
    I, H = w1.shape
    O = w2.shape[1]
    Hp = _round_up(H, _LANE)
    Op = _round_up(O, _LANE)
    w1p = jnp.zeros((I, Hp), jnp.bfloat16).at[:, :H].set(w1.astype(jnp.bfloat16))
    b1p = jnp.zeros((1, Hp), jnp.float32).at[:, :H].set(b1.reshape(1, H))
    w2p = jnp.zeros((Hp, Op), jnp.bfloat16).at[:H, :O].set(w2.astype(jnp.bfloat16))
    b2p = jnp.zeros((1, Op), jnp.float32).at[:, :O].set(b2.reshape(1, O))
    return w1p, b1p, w2p, b2p


@partial(jax.jit, static_argnames=("out_features",))
def mlp_forward(x, w1p, b1p, w2p, b2p, *, out_features):
    """y = relu(x @ w1 + b1) @ w2 + b2 using the fused Pallas kernel.

    x: (B, I) f32/bf16; padded params from prepare_mlp_params().
    """
    B, I = x.shape
    Hp = w1p.shape[1]
    Op = w2p.shape[1]

    # Batch padding: sublane multiple, then tile it with minimal extra rows.
    bp0 = _round_up(max(B, _SUBLANE), _SUBLANE)
    TB = _pick_tile_b(bp0)
    Bp = _round_up(bp0, TB)

    xb = x.astype(jnp.bfloat16)
    if Bp != B:
        xb = jnp.zeros((Bp, I), jnp.bfloat16).at[:B, :].set(xb)

    grid = (Bp // TB,)

    yp = pl.pallas_call(
        mlp_kernel,
        out_shape=jax.ShapeDtypeStruct((Bp, Op), jnp.float32),
        grid_spec=pltpu.PrefetchScalarGridSpec(
            num_scalar_prefetch=0,
            grid=grid,
            in_specs=[
                # x: tiled over batch, real (unpadded) feature dim I.
                pl.BlockSpec((TB, I), lambda i: (i, 0)),
                pl.BlockSpec((I, Hp), lambda i: (0, 0)),    # W1: resident
                pl.BlockSpec((1, Hp), lambda i: (0, 0)),    # b1: resident
                pl.BlockSpec((Hp, Op), lambda i: (0, 0)),   # W2: resident
                pl.BlockSpec((1, Op), lambda i: (0, 0)),    # b2: resident
            ],
            out_specs=pl.BlockSpec((TB, Op), lambda i: (i, 0)),
        ),
        compiler_params=pltpu.CompilerParams(
            # Batch axis shards across TensorCores / pipelines; per-step VMEM
            # footprint is small, so the default scoped VMEM limit is ample.
            dimension_semantics=("parallel",),
        ),
    )(xb, w1p, b1p, w2p, b2p)

    # Slice back to the logical (unpadded) output.
    return yp[:B, :out_features]


def init_linear_params(key, in_features, out_features):
    # Mimics torch.nn.Linear default init: U(-1/sqrt(fan_in), 1/sqrt(fan_in)).
    kw, kb = jax.random.split(key)
    bound = 1.0 / jnp.sqrt(float(in_features))
    # Stored as (in, out) so the kernel does x @ W (PyTorch stores (out, in)
    # and computes x @ W.T — semantics are identical).
    w = jax.random.uniform(kw, (in_features, out_features), jnp.float32,
                           minval=-bound, maxval=bound)
    b = jax.random.uniform(kb, (1, out_features), jnp.float32,
                           minval=-bound, maxval=bound)
    return w, b


if __name__ == "__main__":
    input_size = 10
    hidden_size = 32
    output_size = 1
    batch = 8

    key = jax.random.PRNGKey(0)
    kx, k1, k2 = jax.random.split(key, 3)

    x = jax.random.normal(kx, (batch, input_size), jnp.float32)
    w1, b1 = init_linear_params(k1, input_size, hidden_size)
    w2, b2 = init_linear_params(k2, hidden_size, output_size)

    # Padding / bf16 cast of weights happens once, here (not per call).
    w1p, b1p, w2p, b2p = prepare_mlp_params(w1, b1, w2, b2)

    out = mlp_forward(x, w1p, b1p, w2p, b2p, out_features=output_size)
    out = jax.block_until_ready(out)

    # Pure-JAX f32 reference; tolerance loosened for the bf16 operand cast
    # (accumulation is still f32).
    ref = jnp.maximum(x @ w1 + b1, 0.0) @ w2 + b2
    assert out.shape == (batch, output_size)
    assert jnp.allclose(out, ref, atol=2e-2, rtol=2e-2), (
        float(jnp.max(jnp.abs(out - ref))))

    print("KERNEL_OK")
</pallas_src>

<mosaic_0001>
module attributes {stable_mosaic.version = 11 : i64} {
  func.func @mlp_kernel(%arg0: i32, %arg1: memref<8x10xbf16, #tpu.memory_space<vmem>>, %arg2: memref<10x128xbf16, #tpu.memory_space<vmem>>, %arg3: memref<1x128xf32, #tpu.memory_space<vmem>>, %arg4: memref<128x128xbf16, #tpu.memory_space<vmem>>, %arg5: memref<1x128xf32, #tpu.memory_space<vmem>>, %arg6: memref<8x128xf32, #tpu.memory_space<vmem>>) attributes {dimension_semantics = [#tpu.dimension_semantics<parallel>], iteration_bounds = array<i64: 1>, scalar_prefetch = 0 : i64, scratch_operands = 0 : i64, tpu.core_type = #tpu.core_type<tc>, window_params = [{transform_indices = @transform_0, window_bounds = array<i64: 8, 10>}, {pipeline_mode = #tpu.pipeline_mode<synchronous>, transform_indices = @transform_1, window_bounds = array<i64: 10, 128>}, {pipeline_mode = #tpu.pipeline_mode<synchronous>, transform_indices = @transform_2, window_bounds = array<i64: 1, 128>}, {pipeline_mode = #tpu.pipeline_mode<synchronous>, transform_indices = @transform_3, window_bounds = array<i64: 128, 128>}, {pipeline_mode = #tpu.pipeline_mode<synchronous>, transform_indices = @transform_4, window_bounds = array<i64: 1, 128>}, {transform_indices = @transform_5, window_bounds = array<i64: 8, 128>}]} {
    %c0 = arith.constant 0 : index
    %c0_0 = arith.constant 0 : index
    %0 = vector.load %arg1[%c0, %c0_0] : memref<8x10xbf16, #tpu.memory_space<vmem>>, vector<8x10xbf16>
    %c0_1 = arith.constant 0 : index
    %c0_2 = arith.constant 0 : index
    %1 = vector.load %arg2[%c0_1, %c0_2] : memref<10x128xbf16, #tpu.memory_space<vmem>>, vector<10x128xbf16>
    %cst = arith.constant dense<0.000000e+00> : vector<8x128xf32>
    %2 = tpu.matmul %0, %1, %cst {dimension_numbers = #tpu.dot_dimension_numbers<[1], [0], [0], [1], [0, 0, 1, 1], [], []>} : vector<8x10xbf16>, vector<10x128xbf16>, vector<8x128xf32> -> vector<8x128xf32>
    %c0_3 = arith.constant 0 : index
    %c0_4 = arith.constant 0 : index
    %3 = vector.load %arg3[%c0_3, %c0_4] : memref<1x128xf32, #tpu.memory_space<vmem>>, vector<1x128xf32>
    %4 = vector.broadcast %3 : vector<1x128xf32> to vector<8x128xf32>
    %5 = arith.addf %2, %4 : vector<8x128xf32>
    %cst_5 = arith.constant 0.000000e+00 : f32
    %6 = vector.broadcast %cst_5 : f32 to vector<8x128xf32>
    %7 = arith.maximumf %5, %6 : vector<8x128xf32>
    %8 = arith.truncf %7 : vector<8x128xf32> to vector<8x128xbf16>
    %c0_6 = arith.constant 0 : index
    %c0_7 = arith.constant 0 : index
    %9 = vector.load %arg4[%c0_6, %c0_7] : memref<128x128xbf16, #tpu.memory_space<vmem>>, vector<128x128xbf16>
    %cst_8 = arith.constant dense<0.000000e+00> : vector<8x128xf32>
    %10 = tpu.matmul %8, %9, %cst_8 {dimension_numbers = #tpu.dot_dimension_numbers<[1], [0], [0], [1], [0, 0, 1, 1], [], []>} : vector<8x128xbf16>, vector<128x128xbf16>, vector<8x128xf32> -> vector<8x128xf32>
    %c0_9 = arith.constant 0 : index
    %c0_10 = arith.constant 0 : index
    %11 = vector.load %arg5[%c0_9, %c0_10] : memref<1x128xf32, #tpu.memory_space<vmem>>, vector<1x128xf32>
    %12 = vector.broadcast %11 : vector<1x128xf32> to vector<8x128xf32>
    %13 = arith.addf %10, %12 : vector<8x128xf32>
    %c0_11 = arith.constant 0 : index
    %c0_12 = arith.constant 0 : index
    %14 = vector.load %arg6[%c0_11, %c0_12] : memref<8x128xf32, #tpu.memory_space<vmem>>, vector<8x128xf32>
    tpu.vector_store %arg6[%c0_11, %c0_12], %13 {strides = array<i32>} : memref<8x128xf32, #tpu.memory_space<vmem>>, vector<8x128xf32>,
    return
  }
  func.func @transform_0(%arg0: i32) -> (i32, i32) {
    %c0_i32 = arith.constant 0 : i32
    %c0_i32_0 = arith.constant 0 : i32
    return %arg0, %c0_i32 : i32, i32
  }
  func.func @transform_1(%arg0: i32) -> (i32, i32) {
    %c0_i32 = arith.constant 0 : i32
    %c0_i32_0 = arith.constant 0 : i32
    %c0_i32_1 = arith.constant 0 : i32
    return %c0_i32, %c0_i32_0 : i32, i32
  }
  func.func @transform_2(%arg0: i32) -> (i32, i32) {
    %c0_i32 = arith.constant 0 : i32
    %c0_i32_0 = arith.constant 0 : i32
    %c0_i32_1 = arith.constant 0 : i32
    return %c0_i32, %c0_i32_0 : i32, i32
  }
  func.func @transform_3(%arg0: i32) -> (i32, i32) {
    %c0_i32 = arith.constant 0 : i32
    %c0_i32_0 = arith.constant 0 : i32
    %c0_i32_1 = arith.constant 0 : i32
    return %c0_i32, %c0_i32_0 : i32, i32
  }
  func.func @transform_4(%arg0: i32) -> (i32, i32) {
    %c0_i32 = arith.constant 0 : i32
    %c0_i32_0 = arith.constant 0 : i32
    %c0_i32_1 = arith.constant 0 : i32
    return %c0_i32, %c0_i32_0 : i32, i32
  }
  func.func @transform_5(%arg0: i32) -> (i32, i32) {
    %c0_i32 = arith.constant 0 : i32
    %c0_i32_0 = arith.constant 0 : i32
    return %arg0, %c0_i32 : i32, i32
  }
}

</mosaic_0001>

<llo_original>
// kernel: mlp_forward.1
$region0: #{mlp_forward.1}
  #allocation0 [shape = 'u32[]', space=smem, size = 0x4, offset = 0x4, fixed_abs, tag = 'smem constant byte address 0x4 - core index']
  #allocation1 [shape = 'u32[72,128]{1,0:T(1,128)}', space=vmem, size = 0x9000, scoped, tag = 'internal scratch']
  %s0 = inlined_call_operand.vmem [shape: bf16[8,10], index: 0, kind: input, shape index: {}]
  %s1 = inlined_call_operand.vmem [shape: bf16[10,128], index: 1, kind: input, shape index: {}]
  %s2 = inlined_call_operand.vmem [shape: f32[1,128], index: 2, kind: input, shape index: {}]
  %s3 = inlined_call_operand.hbm [shape: bf16[128,128], index: 3, kind: input, shape index: {}]
  %s4 = inlined_call_operand.vmem [shape: f32[1,128], index: 4, kind: input, shape index: {}]
  %s5 = inlined_call_operand.vmem [shape: f32[8,128], index: 5, kind: output, shape index: {}]
  %s6 = sld [smem:[#allocation0]]
  $region34: #{mlp_forward.1} parent=0
    _
  %s8 = ssub.s32 1, %s6
  %s9 = scalar_select 0, %s8, %s6
  $region1: #{mlp_forward.1} parent=0
    #allocation2 [shape = 'u8[32768]{0}', space=vmem, size = 0x8000, scoped, tag = 'input window, operand 3, single buffered']
    #allocation3 [shape = 's32[1]{0}', space=sflag, size = 0x4, scoped, tag = 'scoped memory for mlp_forward.1']
    %10 = vsyncpa [#allocation3], 0
    // Predicated region
    $region2: #{mlp_forward.1} parent=1 // pred_check
      _
    $region3: #{mlp_forward.1} parent=1 // pred_check_branch
      %12 = sbr.rel (0) target = $region5
    $region4: #{mlp_forward.1} parent=1 // pred_region
      _
    $region5: #{mlp_forward.1} parent=1 // pred_fallthru
      _
    // Predicated region
    $region6: #{mlp_forward.1} parent=1 // pred_check
      _
    $region7: #{mlp_forward.1} parent=1 // pred_check_branch
      %14 = sbr.rel (0) target = $region9
    $region8: #{mlp_forward.1} parent=1 // pred_region
      _
    $region9: #{mlp_forward.1} parent=1 // pred_fallthru
      _
    // Predicated region
    $region10: #{mlp_forward.1} parent=1 // pred_check
      _
    $region11: #{mlp_forward.1} parent=1 // pred_check_branch
      %16 = sbr.rel (0) target = $region13
    $region12: #{mlp_forward.1} parent=1 // pred_region
      _
    $region13: #{mlp_forward.1} parent=1 // pred_fallthru
      _
    // Predicated region
    $region14: #{mlp_forward.1} parent=1 // pred_check
      _
    $region15: #{mlp_forward.1} parent=1 // pred_check_branch
      %18 = sbr.rel (0) target = $region17
    $region16: #{mlp_forward.1} parent=1 // pred_region
      %20 = vsyncadd [#allocation3], 0
      %s21 = sshll.u32 %s3, 4
      %s22 = int_to_ptr.hbm [resolvable:$true] %s21
      %s23 = sshll.u32 [#allocation2], 4
      %s24 = int_to_ptr.vmem [resolvable:$true] %s23
      %29 = dma.hbm_to_vmem [thread:$0]  %s22, 1024, %s24, [#allocation3], 64, 64, 4
    $region17: #{mlp_forward.1} parent=1 // pred_fallthru
      _
    // Predicated region
    $region18: #{mlp_forward.1} parent=1 // pred_check
      _
    $region19: #{mlp_forward.1} parent=1 // pred_check_branch
      %31 = sbr.rel (0) target = $region21
    $region20: #{mlp_forward.1} parent=1 // pred_region
      _
    $region21: #{mlp_forward.1} parent=1 // pred_fallthru
      _
    // Predicated region
    $region22: #{mlp_forward.1} parent=1 // pred_check
      _
    $region23: #{mlp_forward.1} parent=1 // pred_check_branch
      %33 = sbr.rel (0) target = $region25
    $region24: #{mlp_forward.1} parent=1 // pred_region
      %35 = dma.done [#allocation3], 1024
    $region25: #{mlp_forward.1} parent=1 // pred_fallthru
      _
    %v37 = vld [vmem:[%s0] sm:$0xf]
    %v38 = vld [vmem:[%s1] sm:$0xf]
    %v39 = vld [vmem:[%s1 + $0x4] sm:$0x1]
    %v40 = vld [vmem:[%s2] sm:$0x1]
    %v42 = vperm.slane %v40, 0
    %v46 = vunpack.c.l.b16 %v38
    %v47 = vunpack.c.l.b16 %v39
    %v48 = vpack.c.b16 %v47, %v46
    %vm49 = vcmask 80896
    %v51 = vsel %vm49, %v37, 0
    %vm53 = vcmask 1044480
    %v55 = vsel %vm53, %v48, 0
    %57 = vmatpush.bf16.msra.mxu0 0
    %58 = vmatpush.bf16.msra.mxu0 0
    %59 = vmatpush.bf16.msra.mxu0 0
    %60 = vmatpush.bf16.msra.mxu0 0
    %61 = vmatpush.bf16.msra.mxu0 0
    %62 = vmatpush.bf16.msra.mxu0 0
    %63 = vmatpush.bf16.msra.mxu0 0
    %64 = vmatpush.bf16.msra.mxu0 %v55
    %65 = vmatmul.bf16.gmra.mxu0 %v51
    %v66 = vpop.f32.mrf.mxu0
    %v67 = vadd.f32 %v42, %v66
    %v68 = vpop.f32.mrf.mxu0
    %69 = vdwg.mxu0
    %v70 = vmax.f32 %v67, 0.0
    %v71 = vpack.c.bf16 %v70, %v70
    %v72 = vld [vmem:[#allocation2] sm:$0xf]
    %v73 = vld [vmem:[#allocation2 + $0x4] sm:$0xf]
    %v74 = vld [vmem:[#allocation2 + $0x8] sm:$0xf]
    %v75 = vld [vmem:[#allocation2 + $0xc] sm:$0xf]
    %v76 = vld [vmem:[#allocation2 + $0x10] sm:$0xf]
    %v77 = vld [vmem:[#allocation2 + $0x14] sm:$0xf]
    %v78 = vld [vmem:[#allocation2 + $0x18] sm:$0xf]
    %v79 = vld [vmem:[#allocation2 + $0x1c] sm:$0xf]
    %v80 = vld [vmem:[#allocation2 + $0x20] sm:$0xf]
    %v81 = vld [vmem:[#allocation2 + $0x24] sm:$0xf]
    %v82 = vld [vmem:[#allocation2 + $0x28] sm:$0xf]
    %v83 = vld [vmem:[#allocation2 + $0x2c] sm:$0xf]
    %v84 = vld [vmem:[#allocation2 + $0x30] sm:$0xf]
    %v85 = vld [vmem:[#allocation2 + $0x34] sm:$0xf]
    %v86 = vld [vmem:[#allocation2 + $0x38] sm:$0xf]
    %v87 = vld [vmem:[#allocation2 + $0x3c] sm:$0xf]
    %v88 = vld [vmem:[%s4] sm:$0x1]
    %v90 = vperm.slane %v88, 0
    %v108 = vunpack.c.l.b16 %v72
    %v109 = vunpack.c.l.b16 %v73
    %v110 = vunpack.c.l.b16 %v74
    %v111 = vunpack.c.l.b16 %v75
    %v112 = vunpack.c.l.b16 %v76
    %v113 = vunpack.c.l.b16 %v77
    %v114 = vunpack.c.l.b16 %v78
    %v115 = vunpack.c.l.b16 %v79
    %v116 = vunpack.c.l.b16 %v80
    %v117 = vunpack.c.l.b16 %v81
    %v118 = vunpack.c.l.b16 %v82
    %v119 = vunpack.c.l.b16 %v83
    %v120 = vunpack.c.l.b16 %v84
    %v121 = vunpack.c.l.b16 %v85
    %v122 = vunpack.c.l.b16 %v86
    %v123 = vunpack.c.l.b16 %v87
    %v124 = vpack.c.b16 %v109, %v108
    %v125 = vpack.c.b16 %v111, %v110
    %v126 = vpack.c.b16 %v113, %v112
    %v127 = vpack.c.b16 %v115, %v114
    %v128 = vpack.c.b16 %v117, %v116
    %v129 = vpack.c.b16 %v119, %v118
    %v130 = vpack.c.b16 %v121, %v120
    %v131 = vpack.c.b16 %v123, %v122
    %140 = vmatpush.bf16.msra.mxu0 %v131
    %141 = vmatpush.bf16.msra.mxu0 %v130
    %142 = vmatpush.bf16.msra.mxu0 %v129
    %143 = vmatpush.bf16.msra.mxu0 %v128
    %144 = vmatpush.bf16.msra.mxu0 %v127
    %145 = vmatpush.bf16.msra.mxu0 %v126
    %146 = vmatpush.bf16.msra.mxu0 %v125
    %147 = vmatpush.bf16.msra.mxu0 %v124
    %148 = vmatmul.bf16.gmra.mxu0 %v71
    %v149 = vpop.f32.mrf.mxu0
    %v150 = vadd.f32 %v90, %v149
    %v151 = vpop.f32.mrf.mxu0
    %152 = vdwg.mxu0
    %153 = vst [vmem:[%s5] sm:$0xff] %v150
    // Predicated region
    $region26: #{mlp_forward.1} parent=1 // pred_check
      _
    $region27: #{mlp_forward.1} parent=1 // pred_check_branch
      %155 = sbr.rel (0) target = $region29
    $region28: #{mlp_forward.1} parent=1 // pred_region
      _
    $region29: #{mlp_forward.1} parent=1 // pred_fallthru
      _
    // Predicated region
    $region30: #{mlp_forward.1} parent=1 // pred_check
      _
    $region31: #{mlp_forward.1} parent=1 // pred_check_branch
      %157 = sbr.rel (0) target = $region33
    $region32: #{mlp_forward.1} parent=1 // pred_region
      _
    $region33: #{mlp_forward.1} parent=1 // pred_fallthru
      _
    %158 = vsyncpa [#allocation3], 1

</llo_original>
